<compile_context>
chip_gen: v7x
topology: tpu7x:2x2x1
jax: 0.10.0
libtpu: 0.0.40
codegen_flags: <defaults>
</compile_context>

<pallas_src>
import functools

import jax
import jax.numpy as jnp
import numpy as np
from jax.experimental import pallas as pl
from jax.experimental.pallas import tpu as pltpu


def _perceptual_kernel(p_ref, t_ref, rip_ref, out_ref, *, H, use_l1, has_pad_rows):
    """One grid step: (R, W) = (b_blk * Hp, W) folded planes -> (1, 1, W) partial sum."""
    R, W = p_ref.shape
    p = p_ref[...].astype(jnp.float32)
    t = t_ref[...].astype(jnp.float32)

    # Boundary masks, built once and reused for both normal maps.
    col = jax.lax.broadcasted_iota(jnp.int32, (R, W), 1)
    first_col = col == 0
    last_col = col == W - 1
    rip = rip_ref[...]                     # (R, 1) f32, row index within its plane
    first_row = rip == 0.0
    last_row = rip == float(H - 1)

    def normals(d):
        # Column (lane) shifts with implicit zero halo (conv2d padding=1 semantics).
        left = jnp.where(first_col, 0.0, pltpu.roll(d, 1, axis=1))      # d[i, j-1]
        right = jnp.where(last_col, 0.0, pltpu.roll(d, W - 1, axis=1))  # d[i, j+1]
        # Separable Sobel, column pass.
        a = right - left                 # gx = a[i-1] + 2 a[i] + a[i+1]
        b = left + 2.0 * d + right       # gy = b[i+1] - b[i-1]
        # Row (sublane) shifts; the masks also cut the circular roll at plane
        # boundaries so no data leaks between batch planes folded in this block.
        a_up = jnp.where(first_row, 0.0, pltpu.roll(a, 1, axis=0))      # a[i-1, j]
        a_dn = jnp.where(last_row, 0.0, pltpu.roll(a, R - 1, axis=0))   # a[i+1, j]
        b_up = jnp.where(first_row, 0.0, pltpu.roll(b, 1, axis=0))
        b_dn = jnp.where(last_row, 0.0, pltpu.roll(b, R - 1, axis=0))
        gx = a_up + 2.0 * a + a_dn
        gy = b_dn - b_up
        # ||(gx, gy, 1)|| >= 1, so F.normalize's eps=1e-6 clamp is dead code.
        inv = jax.lax.rsqrt(gx * gx + gy * gy + 1.0)
        return gx * inv, gy * inv, inv   # (nx, ny, nz)

    pnx, pny, pnz = normals(p)
    tnx, tny, tnz = normals(t)

    dx = pnx - tnx
    dy = pny - tny
    dz = pnz - tnz
    if use_l1:
        e = jnp.abs(dx) + jnp.abs(dy) + jnp.abs(dz)
    else:
        e = dx * dx + dy * dy + dz * dz
    if has_pad_rows:
        # Zero-padded rows (H -> Hp) must not contribute to the sum.
        e = jnp.where(rip < float(H), e, 0.0)

    # Lane-shaped partial row-sum; the short cross-block reduce runs in the wrapper.
    out_ref[...] = jnp.sum(e, axis=0, keepdims=True).reshape(1, 1, W)


def perceptual_loss(preds, target, discrepancy_error="L2", block_bytes=1536 * 1024):
    """preds, target: (N, 1, H, W) NCHW depth maps. Returns scalar float32 loss."""
    if discrepancy_error not in ("L1", "L2"):
        raise ValueError("discrepancy_error must be 'L1' or 'L2'")
    N, C, H, W = preds.shape
    assert C == 1, "PerceptualLoss expects single-channel depth maps"
    assert target.shape == preds.shape

    # Keep bf16 inputs narrow (upcast happens in-kernel); everything else -> f32.
    def to_kernel_dtype(x):
        return x if x.dtype in (jnp.bfloat16, jnp.float32) else x.astype(jnp.float32)

    preds = to_kernel_dtype(preds)
    target = to_kernel_dtype(target)

    # Pad every plane to a multiple of 8 rows so the folded (rows, W) layout is
    # sublane-aligned for any H; padded rows are masked out of the sum in-kernel.
    Hp = -(-H // 8) * 8

    # Batch blocking: largest "nice" divisor of N near the byte cap, else pad N
    # with zero planes (exactly-zero loss contribution). Cap at ceil(N/2) so
    # both v7x TensorCores get grid steps when N >= 2.
    plane_f32 = Hp * W * 4
    cap = max(1, min(N, block_bytes // plane_f32))
    if N >= 2:
        cap = min(cap, -(-N // 2))
    b_blk = cap
    for d in range(cap, 0, -1):
        if N % d == 0:
            if 2 * d >= cap:
                b_blk = d
            break
    num_blocks = -(-N // b_blk)
    Np = num_blocks * b_blk
    R = b_blk * Hp

    def prep(x):
        x = x.reshape(N, H, W)
        if Np != N or Hp != H:
            x = jnp.pad(x, ((0, Np - N), (0, Hp - H), (0, 0)))
        return x.reshape(Np * Hp, W)

    p2 = prep(preds)
    t2 = prep(target)
    # Exact per-plane row index, shared (resident) across all grid steps.
    row_in_plane = jnp.asarray(
        (np.arange(R) % Hp).astype(np.float32).reshape(R, 1))

    in_itemsize = p2.dtype.itemsize
    kernel = functools.partial(
        _perceptual_kernel, H=H,
        use_l1=(discrepancy_error == "L1"), has_pad_rows=(Hp != H))

    # ~18 block-sized f32 live temporaries + double-buffered inputs, <= 48 MiB
    # so the tile also fits v7x's 64 MiB physical VMEM.
    vmem_need = 2 * 2 * R * W * in_itemsize + 18 * R * W * 4
    vmem_limit = int(min(48 << 20, max(vmem_need + (1 << 20), 16 << 20)))

    total_elems = Np * Hp * W
    cost = pl.CostEstimate(
        flops=44 * total_elems,
        transcendentals=2 * total_elems,
        bytes_accessed=2 * total_elems * in_itemsize + num_blocks * W * 4 + R * 4,
    )

    partials = pl.pallas_call(
        kernel,
        out_shape=jax.ShapeDtypeStruct((num_blocks, 1, W), jnp.float32),
        grid=(num_blocks,),
        in_specs=[
            pl.BlockSpec((R, W), lambda n: (n, 0)),
            pl.BlockSpec((R, W), lambda n: (n, 0)),
            pl.BlockSpec((R, 1), lambda n: (0, 0)),
        ],
        out_specs=pl.BlockSpec((1, 1, W), lambda n: (n, 0, 0)),
        compiler_params=pltpu.CompilerParams(
            dimension_semantics=("parallel",),
            vmem_limit_bytes=vmem_limit,
        ),
        cost_estimate=cost,
    )(p2, t2, row_in_plane)

    total = jnp.sum(partials)
    # Mean over the (N, 3, H, W) normal-map difference tensor (true sizes).
    return total / jnp.float32(N * 3 * H * W)


def _reference_loss(preds, target, discrepancy_error="L2"):
    """Pure-JAX reference of the PyTorch forward for validation."""
    def normal_map(x):  # x: (N, 1, H, W)
        H, W = x.shape[2], x.shape[3]
        d = jnp.pad(x[:, 0], ((0, 0), (1, 1), (1, 1)))
        c = lambda r, col: d[:, r:r + H, col:col + W]
        gx = (-c(0, 0) + c(0, 2)) + (-2 * c(1, 0) + 2 * c(1, 2)) + (-c(2, 0) + c(2, 2))
        gy = (-c(0, 0) - 2 * c(0, 1) - c(0, 2)) + (c(2, 0) + 2 * c(2, 1) + c(2, 2))
        nz = jnp.ones_like(gx)
        n = jnp.stack([gx, gy, nz], axis=1)
        norm = jnp.sqrt(jnp.sum(n * n, axis=1, keepdims=True))
        return n / jnp.maximum(norm, 1e-6)

    a, b = normal_map(preds), normal_map(target)
    if discrepancy_error == "L1":
        return jnp.mean(jnp.abs(a - b))
    return jnp.mean((a - b) ** 2)


if __name__ == "__main__":
    key = jax.random.PRNGKey(0)
    configs = [
        ((2, 1, 16, 16), "L2"),
        ((2, 1, 16, 16), "L1"),
        ((3, 1, 24, 40), "L2"),
        # Exercises row padding (H=13 -> 16), batch padding (N=5 -> 6), b_blk=3.
        ((5, 1, 13, 40), "L1"),
    ]
    for i, (shape, err) in enumerate(configs):
        k1, k2 = jax.random.split(jax.random.fold_in(key, i))
        preds = jax.random.normal(k1, shape, dtype=jnp.float32)
        target = jax.random.normal(k2, shape, dtype=jnp.float32)

        out = jax.block_until_ready(perceptual_loss(preds, target, err))
        ref = jax.block_until_ready(_reference_loss(preds, target, err))
        np.testing.assert_allclose(
            np.asarray(out), np.asarray(ref), rtol=2e-5, atol=2e-6
        )

    print("KERNEL_OK")
</pallas_src>

<mosaic_0001>
module attributes {stable_mosaic.version = 11 : i64} {
  func.func @_perceptual_kernel(%arg0: i32, %arg1: memref<16x16xf32, #tpu.memory_space<vmem>>, %arg2: memref<16x16xf32, #tpu.memory_space<vmem>>, %arg3: memref<16x1xf32, #tpu.memory_space<vmem>>, %arg4: memref<1x1x16xf32, #tpu.memory_space<vmem>>) attributes {dimension_semantics = [#tpu.dimension_semantics<parallel>], iteration_bounds = array<i64: 2>, scalar_prefetch = 0 : i64, scratch_operands = 0 : i64, tpu.core_type = #tpu.core_type<tc>, window_params = [{transform_indices = @transform_0, window_bounds = array<i64: 16, 16>}, {transform_indices = @transform_1, window_bounds = array<i64: 16, 16>}, {pipeline_mode = #tpu.pipeline_mode<synchronous>, transform_indices = @transform_2, window_bounds = array<i64: 16, 1>}, {transform_indices = @transform_3, window_bounds = array<i64: 1, 1, 16>}]} {
    %c0 = arith.constant 0 : index
    %c0_0 = arith.constant 0 : index
    %0 = vector.load %arg1[%c0, %c0_0] : memref<16x16xf32, #tpu.memory_space<vmem>>, vector<16x16xf32>
    %c0_1 = arith.constant 0 : index
    %c0_2 = arith.constant 0 : index
    %1 = vector.load %arg2[%c0_1, %c0_2] : memref<16x16xf32, #tpu.memory_space<vmem>>, vector<16x16xf32>
    %2 = tpu.iota {dimensions = array<i32: 1>} : vector<16x16xi32>
    %c0_i32 = arith.constant 0 : i32
    %3 = vector.broadcast %c0_i32 : i32 to vector<16x16xi32>
    %4 = arith.cmpi eq, %2, %3 : vector<16x16xi32>
    %c15_i32 = arith.constant 15 : i32
    %5 = vector.broadcast %c15_i32 : i32 to vector<16x16xi32>
    %6 = arith.cmpi eq, %2, %5 : vector<16x16xi32>
    %c0_3 = arith.constant 0 : index
    %c0_4 = arith.constant 0 : index
    %7 = vector.load %arg3[%c0_3, %c0_4] : memref<16x1xf32, #tpu.memory_space<vmem>>, vector<16x1xf32>
    %cst = arith.constant 0.000000e+00 : f32
    %8 = vector.broadcast %cst : f32 to vector<16x1xf32>
    %9 = arith.cmpf oeq, %7, %8 : vector<16x1xf32>
    %cst_5 = arith.constant 1.500000e+01 : f32
    %10 = vector.broadcast %cst_5 : f32 to vector<16x1xf32>
    %11 = arith.cmpf oeq, %7, %10 : vector<16x1xf32>
    %c1_i32 = arith.constant 1 : i32
    %12 = tpu.dynamic_rotate %0 by %c1_i32 dim 1 : vector<16x16xf32>, i32 -> vector<16x16xf32>
    %cst_6 = arith.constant 0.000000e+00 : f32
    %13 = vector.broadcast %cst_6 : f32 to vector<16x16xf32>
    %14 = arith.select %4, %13, %12 : vector<16x16xi1>, vector<16x16xf32>
    %c15_i32_7 = arith.constant 15 : i32
    %15 = tpu.dynamic_rotate %0 by %c15_i32_7 dim 1 : vector<16x16xf32>, i32 -> vector<16x16xf32>
    %cst_8 = arith.constant 0.000000e+00 : f32
    %16 = vector.broadcast %cst_8 : f32 to vector<16x16xf32>
    %17 = arith.select %6, %16, %15 : vector<16x16xi1>, vector<16x16xf32>
    %18 = arith.subf %17, %14 : vector<16x16xf32>
    %cst_9 = arith.constant 2.000000e+00 : f32
    %19 = vector.broadcast %cst_9 : f32 to vector<16x16xf32>
    %20 = arith.mulf %19, %0 : vector<16x16xf32>
    %21 = arith.addf %14, %20 : vector<16x16xf32>
    %22 = arith.addf %21, %17 : vector<16x16xf32>
    %c1_i32_10 = arith.constant 1 : i32
    %23 = tpu.dynamic_rotate %18 by %c1_i32_10 dim 0 : vector<16x16xf32>, i32 -> vector<16x16xf32>
    %cst_11 = arith.constant 0.000000e+00 : f32
    %24 = vector.shape_cast %9 : vector<16x1xi1> to vector<16x1xi1>
    %25 = vector.broadcast %24 : vector<16x1xi1> to vector<16x16xi1>
    %26 = vector.broadcast %cst_11 : f32 to vector<16x16xf32>
    %27 = arith.select %25, %26, %23 : vector<16x16xi1>, vector<16x16xf32>
    %c15_i32_12 = arith.constant 15 : i32
    %28 = tpu.dynamic_rotate %18 by %c15_i32_12 dim 0 : vector<16x16xf32>, i32 -> vector<16x16xf32>
    %cst_13 = arith.constant 0.000000e+00 : f32
    %29 = vector.shape_cast %11 : vector<16x1xi1> to vector<16x1xi1>
    %30 = vector.broadcast %29 : vector<16x1xi1> to vector<16x16xi1>
    %31 = vector.broadcast %cst_13 : f32 to vector<16x16xf32>
    %32 = arith.select %30, %31, %28 : vector<16x16xi1>, vector<16x16xf32>
    %c1_i32_14 = arith.constant 1 : i32
    %33 = tpu.dynamic_rotate %22 by %c1_i32_14 dim 0 : vector<16x16xf32>, i32 -> vector<16x16xf32>
    %cst_15 = arith.constant 0.000000e+00 : f32
    %34 = vector.shape_cast %9 : vector<16x1xi1> to vector<16x1xi1>
    %35 = vector.broadcast %34 : vector<16x1xi1> to vector<16x16xi1>
    %36 = vector.broadcast %cst_15 : f32 to vector<16x16xf32>
    %37 = arith.select %35, %36, %33 : vector<16x16xi1>, vector<16x16xf32>
    %c15_i32_16 = arith.constant 15 : i32
    %38 = tpu.dynamic_rotate %22 by %c15_i32_16 dim 0 : vector<16x16xf32>, i32 -> vector<16x16xf32>
    %cst_17 = arith.constant 0.000000e+00 : f32
    %39 = vector.shape_cast %11 : vector<16x1xi1> to vector<16x1xi1>
    %40 = vector.broadcast %39 : vector<16x1xi1> to vector<16x16xi1>
    %41 = vector.broadcast %cst_17 : f32 to vector<16x16xf32>
    %42 = arith.select %40, %41, %38 : vector<16x16xi1>, vector<16x16xf32>
    %cst_18 = arith.constant 2.000000e+00 : f32
    %43 = vector.broadcast %cst_18 : f32 to vector<16x16xf32>
    %44 = arith.mulf %43, %18 : vector<16x16xf32>
    %45 = arith.addf %27, %44 : vector<16x16xf32>
    %46 = arith.addf %45, %32 : vector<16x16xf32>
    %47 = arith.subf %42, %37 : vector<16x16xf32>
    %48 = arith.mulf %46, %46 : vector<16x16xf32>
    %49 = arith.mulf %47, %47 : vector<16x16xf32>
    %50 = arith.addf %48, %49 : vector<16x16xf32>
    %cst_19 = arith.constant 1.000000e+00 : f32
    %51 = vector.broadcast %cst_19 : f32 to vector<16x16xf32>
    %52 = arith.addf %50, %51 : vector<16x16xf32>
    %53 = math.rsqrt %52 : vector<16x16xf32>
    %54 = arith.mulf %46, %53 : vector<16x16xf32>
    %55 = arith.mulf %47, %53 : vector<16x16xf32>
    %c1_i32_20 = arith.constant 1 : i32
    %56 = tpu.dynamic_rotate %1 by %c1_i32_20 dim 1 : vector<16x16xf32>, i32 -> vector<16x16xf32>
    %cst_21 = arith.constant 0.000000e+00 : f32
    %57 = vector.broadcast %cst_21 : f32 to vector<16x16xf32>
    %58 = arith.select %4, %57, %56 : vector<16x16xi1>, vector<16x16xf32>
    %c15_i32_22 = arith.constant 15 : i32
    %59 = tpu.dynamic_rotate %1 by %c15_i32_22 dim 1 : vector<16x16xf32>, i32 -> vector<16x16xf32>
    %cst_23 = arith.constant 0.000000e+00 : f32
    %60 = vector.broadcast %cst_23 : f32 to vector<16x16xf32>
    %61 = arith.select %6, %60, %59 : vector<16x16xi1>, vector<16x16xf32>
    %62 = arith.subf %61, %58 : vector<16x16xf32>
    %cst_24 = arith.constant 2.000000e+00 : f32
    %63 = vector.broadcast %cst_24 : f32 to vector<16x16xf32>
    %64 = arith.mulf %63, %1 : vector<16x16xf32>
    %65 = arith.addf %58, %64 : vector<16x16xf32>
    %66 = arith.addf %65, %61 : vector<16x16xf32>
    %c1_i32_25 = arith.constant 1 : i32
    %67 = tpu.dynamic_rotate %62 by %c1_i32_25 dim 0 : vector<16x16xf32>, i32 -> vector<16x16xf32>
    %cst_26 = arith.constant 0.000000e+00 : f32
    %68 = vector.shape_cast %9 : vector<16x1xi1> to vector<16x1xi1>
    %69 = vector.broadcast %68 : vector<16x1xi1> to vector<16x16xi1>
    %70 = vector.broadcast %cst_26 : f32 to vector<16x16xf32>
    %71 = arith.select %69, %70, %67 : vector<16x16xi1>, vector<16x16xf32>
    %c15_i32_27 = arith.constant 15 : i32
    %72 = tpu.dynamic_rotate %62 by %c15_i32_27 dim 0 : vector<16x16xf32>, i32 -> vector<16x16xf32>
    %cst_28 = arith.constant 0.000000e+00 : f32
    %73 = vector.shape_cast %11 : vector<16x1xi1> to vector<16x1xi1>
    %74 = vector.broadcast %73 : vector<16x1xi1> to vector<16x16xi1>
    %75 = vector.broadcast %cst_28 : f32 to vector<16x16xf32>
    %76 = arith.select %74, %75, %72 : vector<16x16xi1>, vector<16x16xf32>
    %c1_i32_29 = arith.constant 1 : i32
    %77 = tpu.dynamic_rotate %66 by %c1_i32_29 dim 0 : vector<16x16xf32>, i32 -> vector<16x16xf32>
    %cst_30 = arith.constant 0.000000e+00 : f32
    %78 = vector.shape_cast %9 : vector<16x1xi1> to vector<16x1xi1>
    %79 = vector.broadcast %78 : vector<16x1xi1> to vector<16x16xi1>
    %80 = vector.broadcast %cst_30 : f32 to vector<16x16xf32>
    %81 = arith.select %79, %80, %77 : vector<16x16xi1>, vector<16x16xf32>
    %c15_i32_31 = arith.constant 15 : i32
    %82 = tpu.dynamic_rotate %66 by %c15_i32_31 dim 0 : vector<16x16xf32>, i32 -> vector<16x16xf32>
    %cst_32 = arith.constant 0.000000e+00 : f32
    %83 = vector.shape_cast %11 : vector<16x1xi1> to vector<16x1xi1>
    %84 = vector.broadcast %83 : vector<16x1xi1> to vector<16x16xi1>
    %85 = vector.broadcast %cst_32 : f32 to vector<16x16xf32>
    %86 = arith.select %84, %85, %82 : vector<16x16xi1>, vector<16x16xf32>
    %cst_33 = arith.constant 2.000000e+00 : f32
    %87 = vector.broadcast %cst_33 : f32 to vector<16x16xf32>
    %88 = arith.mulf %87, %62 : vector<16x16xf32>
    %89 = arith.addf %71, %88 : vector<16x16xf32>
    %90 = arith.addf %89, %76 : vector<16x16xf32>
    %91 = arith.subf %86, %81 : vector<16x16xf32>
    %92 = arith.mulf %90, %90 : vector<16x16xf32>
    %93 = arith.mulf %91, %91 : vector<16x16xf32>
    %94 = arith.addf %92, %93 : vector<16x16xf32>
    %cst_34 = arith.constant 1.000000e+00 : f32
    %95 = vector.broadcast %cst_34 : f32 to vector<16x16xf32>
    %96 = arith.addf %94, %95 : vector<16x16xf32>
    %97 = math.rsqrt %96 : vector<16x16xf32>
    %98 = arith.mulf %90, %97 : vector<16x16xf32>
    %99 = arith.mulf %91, %97 : vector<16x16xf32>
    %100 = arith.subf %54, %98 : vector<16x16xf32>
    %101 = arith.subf %55, %99 : vector<16x16xf32>
    %102 = arith.subf %53, %97 : vector<16x16xf32>
    %103 = arith.mulf %100, %100 : vector<16x16xf32>
    %104 = arith.mulf %101, %101 : vector<16x16xf32>
    %105 = arith.addf %103, %104 : vector<16x16xf32>
    %106 = arith.mulf %102, %102 : vector<16x16xf32>
    %107 = arith.addf %105, %106 : vector<16x16xf32>
    %cst_35 = arith.constant dense<0.000000e+00> : vector<16xf32>
    %108 = vector.multi_reduction <add>, %107, %cst_35 [0] : vector<16x16xf32> to vector<16xf32>
    %109 = vector.shape_cast %108 : vector<16xf32> to vector<1x16xf32>
    %110 = vector.shape_cast %109 : vector<1x16xf32> to vector<1x1x16xf32>
    %c0_36 = arith.constant 0 : index
    %c0_37 = arith.constant 0 : index
    %c0_38 = arith.constant 0 : index
    %111 = vector.load %arg4[%c0_36, %c0_37, %c0_38] : memref<1x1x16xf32, #tpu.memory_space<vmem>>, vector<1x1x16xf32>
    tpu.vector_store %arg4[%c0_36, %c0_37, %c0_38], %110 {strides = array<i32>} : memref<1x1x16xf32, #tpu.memory_space<vmem>>, vector<1x1x16xf32>,
    return
  }
  func.func @transform_0(%arg0: i32) -> (i32, i32) {
    %c0_i32 = arith.constant 0 : i32
    %c0_i32_0 = arith.constant 0 : i32
    return %arg0, %c0_i32 : i32, i32
  }
  func.func @transform_1(%arg0: i32) -> (i32, i32) {
    %c0_i32 = arith.constant 0 : i32
    %c0_i32_0 = arith.constant 0 : i32
    return %arg0, %c0_i32 : i32, i32
  }
  func.func @transform_2(%arg0: i32) -> (i32, i32) {
    %c0_i32 = arith.constant 0 : i32
    %c0_i32_0 = arith.constant 0 : i32
    %c0_i32_1 = arith.constant 0 : i32
    return %c0_i32, %c0_i32_0 : i32, i32
  }
  func.func @transform_3(%arg0: i32) -> (i32, i32, i32) {
    %c0_i32 = arith.constant 0 : i32
    %c0_i32_0 = arith.constant 0 : i32
    %c0_i32_1 = arith.constant 0 : i32
    return %arg0, %c0_i32, %c0_i32_0 : i32, i32, i32
  }
}

</mosaic_0001>

<llo_original>
// kernel: tpu_custom_call.1
$region0: #{tpu_custom_call.1}
  #allocation0 [shape = 'u32[]', space=smem, size = 0x4, offset = 0x4, fixed_abs, tag = 'smem constant byte address 0x4 - core index']
  #allocation1 [shape = 'u32[144,128]{1,0:T(1,128)}', space=vmem, size = 0x12000, scoped, tag = 'internal scratch']
  %s0 = inlined_call_operand.vmem [shape: f32[32,16], index: 0, kind: input, shape index: {}]
  %s1 = inlined_call_operand.vmem [shape: f32[32,16], index: 1, kind: input, shape index: {}]
  %s2 = inlined_call_operand.vmem [shape: f32[16,1], index: 2, kind: input, shape index: {}]
  %s3 = inlined_call_operand.hbm [shape: f32[2,1,16], index: 3, kind: output, shape index: {}]
  %s4 = sld [smem:[#allocation0]]
  $region45: #{tpu_custom_call.1} parent=0
    _
  %s6 = ssub.s32 1, %s4
  %s7 = scalar_select 0, %s6, %s4
  $region1: #{tpu_custom_call.1} parent=0
    #allocation2 [shape = 'u8[1024]{0}', space=vmem, size = 0x400, scoped, tag = 'output window, operand 0']
    #allocation3 [shape = 's32[2]{0}', space=sflag, size = 0x8, scoped, tag = 'scoped memory for tpu_custom_call.1']
    %8 = vsyncpa [#allocation3], 0
    %s9 = scalar_lea.sflag [#allocation3], 1
    %10 = vsyncpa %s9, 0
    loop: start=0, step=1, limit=4
    $region2: #{tpu_custom_call.1} parent=1 // loop_pre_header
      _
    $region3: #{tpu_custom_call.1} parent=1 // loop_header
      %s12 = sphi 0, %s16
      %p13 = scmp.ge.s32.totalorder %s12, 4
      %s22 = sphi 0, %s24
      %s25 = sphi 0, %s22
      %s26 = sphi 0, %s25
      %s42 = sphi 0, %s26
      %s48 = sphi 0, %s50
      %s51 = sphi 0, %s48
      %s52 = sphi 0, %s51
      %s68 = sphi 0, %s52
      %s72 = sphi 0, %s72
      %s74 = sphi 0, %s72
      %s75 = sphi 0, %s74
      %s89 = sphi 0, %s75
      %s95 = sphi 0, %s97
      %s98 = sphi 0, %s95
      %s99 = sphi 0, %s98
      %s115 = sphi 0, %s99
    $region4: #{tpu_custom_call.1} parent=1 // loop_header_branch
      %15 = sbr.rel (%p13) target = $region8
    $region5: #{tpu_custom_call.1} parent=1 // loop_body
      %s17 = ssub.s32 %s12, 1
      %s18 = ssub.s32 %s12, 2
      %s19 = sadd.s32 %s12, 1
      %s20 = ssub.s32 %s12, %s19
      %p21 = scmp.eq.s32.totalorder %s20, 0
      %s23 = sadd.s32 %s22, 1
      %s24 = scalar_select %p21, %s22, %s23
      %p27 = pneg %p21
      %p28 = scmp.eq.s32.totalorder %s12, 1
      %p29 = por %p27, %p28
      %p30 = scmp.ne.s32.totalorder %s22, %s25
      %p31 = scmp.eq.s32.totalorder %s12, 0
      %p32 = por %p30, %p31
      %p33 = scmp.ne.s32.totalorder %s22, %s25
      %p34 = scmp.eq.s32.totalorder %s17, 1
      %p35 = por %p33, %p34
      %p36 = scmp.ne.s32.totalorder %s25, %s26
      %p37 = scmp.eq.s32.totalorder %s17, 0
      %p38 = por %p36, %p37
      %p39 = scmp.ne.s32.totalorder %s25, %s26
      %p40 = scmp.eq.s32.totalorder %s18, 1
      %p41 = por %p39, %p40
      %p43 = scmp.ne.s32.totalorder %s26, %s42
      %p44 = scmp.eq.s32.totalorder %s18, 0
      %p45 = por %p43, %p44
      %s46 = ssub.s32 %s12, %s19
      %p47 = scmp.eq.s32.totalorder %s46, 0
      %s49 = sadd.s32 %s48, 1
      %s50 = scalar_select %p47, %s48, %s49
      %p53 = pneg %p47
      %p54 = scmp.eq.s32.totalorder %s12, 1
      %p55 = por %p53, %p54
      %p56 = scmp.ne.s32.totalorder %s48, %s51
      %p57 = scmp.eq.s32.totalorder %s12, 0
      %p58 = por %p56, %p57
      %p59 = scmp.ne.s32.totalorder %s48, %s51
      %p60 = scmp.eq.s32.totalorder %s17, 1
      %p61 = por %p59, %p60
      %p62 = scmp.ne.s32.totalorder %s51, %s52
      %p63 = scmp.eq.s32.totalorder %s17, 0
      %p64 = por %p62, %p63
      %p65 = scmp.ne.s32.totalorder %s51, %s52
      %p66 = scmp.eq.s32.totalorder %s18, 1
      %p67 = por %p65, %p66
      %p69 = scmp.ne.s32.totalorder %s52, %s68
      %p70 = scmp.eq.s32.totalorder %s18, 0
      %p71 = por %p69, %p70
      %s73 = sadd.s32 %s72, 1
      %p76 = scmp.eq.s32.totalorder %s12, 1
      %p77 = scmp.ne.s32.totalorder %s72, %s74
      %p78 = scmp.eq.s32.totalorder %s12, 0
      %p79 = por %p77, %p78
      %p80 = scmp.ne.s32.totalorder %s72, %s74
      %p81 = scmp.eq.s32.totalorder %s17, 1
      %p82 = por %p80, %p81
      %p83 = scmp.ne.s32.totalorder %s74, %s75
      %p84 = scmp.eq.s32.totalorder %s17, 0
      %p85 = por %p83, %p84
      %p86 = scmp.ne.s32.totalorder %s74, %s75
      %p87 = scmp.eq.s32.totalorder %s18, 1
      %p88 = por %p86, %p87
      %p90 = scmp.ne.s32.totalorder %s75, %s89
      %p91 = scmp.eq.s32.totalorder %s18, 0
      %p92 = por %p90, %p91
      %s93 = ssub.s32 %s12, %s19
      %p94 = scmp.eq.s32.totalorder %s93, 0
      %s96 = sadd.s32 %s95, 1
      %s97 = scalar_select %p94, %s95, %s96
      %p100 = pneg %p94
      %p101 = scmp.eq.s32.totalorder %s12, 1
      %p102 = por %p100, %p101
      %p103 = scmp.ne.s32.totalorder %s95, %s98
      %p104 = scmp.eq.s32.totalorder %s12, 0
      %p105 = por %p103, %p104
      %p106 = scmp.ne.s32.totalorder %s95, %s98
      %p107 = scmp.eq.s32.totalorder %s17, 1
      %p108 = por %p106, %p107
      %p109 = scmp.ne.s32.totalorder %s98, %s99
      %p110 = scmp.eq.s32.totalorder %s17, 0
      %p111 = por %p109, %p110
      %p112 = scmp.ne.s32.totalorder %s98, %s99
      %p113 = scmp.eq.s32.totalorder %s18, 1
      %p114 = por %p112, %p113
      %p116 = scmp.ne.s32.totalorder %s99, %s115
      %p117 = scmp.eq.s32.totalorder %s18, 0
      %p118 = por %p116, %p117
      %p119 = scmp.le.s32.totalorder 1, %s12
      %p120 = scmp.lt.s32.totalorder %s12, 3
      %p121 = pnand %p119, %p120
      %p122 = pneg %p121
      // Predicated region
      $region9: #{tpu_custom_call.1} parent=5 // pred_check
        _
      $region10: #{tpu_custom_call.1} parent=5 // pred_check_branch
        %124 = sbr.rel (%p121) target = $region12
      $region11: #{tpu_custom_call.1} parent=5 // pred_region
        %s125 = ssub.s32 %s12, 1
        // Predicated region
        $region13: #{tpu_custom_call.1} parent=11 // pred_check
          %p126 = pneg %p85
        $region14: #{tpu_custom_call.1} parent=11 // pred_check_branch
          %128 = sbr.rel (%p126) target = $region16
        $region15: #{tpu_custom_call.1} parent=11 // pred_region
          _
        $region16: #{tpu_custom_call.1} parent=11 // pred_fallthru
          _
      $region12: #{tpu_custom_call.1} parent=5 // pred_fallthru
        _
      %p129 = scmp.lt.s32.totalorder %s12, 2
      // Predicated region
      $region17: #{tpu_custom_call.1} parent=5 // pred_check
        %p130 = pneg %p129
      $region18: #{tpu_custom_call.1} parent=5 // pred_check_branch
        %132 = sbr.rel (%p130) target = $region20
      $region19: #{tpu_custom_call.1} parent=5 // pred_region
        // Predicated region
        $region21: #{tpu_custom_call.1} parent=19 // pred_check
          %p133 = pneg %p32
        $region22: #{tpu_custom_call.1} parent=19 // pred_check_branch
          %135 = sbr.rel (%p133) target = $region24
        $region23: #{tpu_custom_call.1} parent=19 // pred_region
          %s136 = smul.u32 2, %s12
          %p137 = scmp.lt.s32.totalorder %s136, 3
          %s138 = scalar_select %p137, %s136, 3
          %s139 = smul.addr %s138, 8
          %s140 = scalar_lea.vmem %s0, %s139
          %s141 = smul.u32 2, %s12
        $region24: #{tpu_custom_call.1} parent=19 // pred_fallthru
          _
        // Predicated region
        $region25: #{tpu_custom_call.1} parent=19 // pred_check
          %p142 = pneg %p58
        $region26: #{tpu_custom_call.1} parent=19 // pred_check_branch
          %144 = sbr.rel (%p142) target = $region28
        $region27: #{tpu_custom_call.1} parent=19 // pred_region
          %s145 = smul.u32 2, %s12
          %p146 = scmp.lt.s32.totalorder %s145, 3
          %s147 = scalar_select %p146, %s145, 3
          %s148 = smul.addr %s147, 8
          %s149 = scalar_lea.vmem %s1, %s148
          %s150 = smul.u32 2, %s12
        $region28: #{tpu_custom_call.1} parent=19 // pred_fallthru
          _
      $region20: #{tpu_custom_call.1} parent=5 // pred_fallthru
        _
      %p151 = scmp.le.s32.totalorder 1, %s12
      %p152 = scmp.lt.s32.totalorder %s12, 3
      %p153 = pnand %p151, %p152
      %p154 = pneg %p153
      // Predicated region
      $region29: #{tpu_custom_call.1} parent=5 // pred_check
        _
      $region30: #{tpu_custom_call.1} parent=5 // pred_check_branch
        %156 = sbr.rel (%p153) target = $region32
      $region31: #{tpu_custom_call.1} parent=5 // pred_region
        %s157 = ssub.s32 %s12, 1
        %s158 = smul.u32 2, %s17
        %p159 = scmp.lt.s32.totalorder %s158, 3
        %s160 = scalar_select %p159, %s158, 3
        %s161 = smul.addr %s160, 8
        %s162 = scalar_lea.vmem %s0, %s161
        %p163 = pneg %p38
        %p164 = pneg %p35
        %s165 = smul.u32 2, %s17
        %p166 = scmp.lt.s32.totalorder %s165, 3
        %s167 = scalar_select %p166, %s165, 3
        %s168 = smul.addr %s167, 8
        %s169 = scalar_lea.vmem %s1, %s168
        %p170 = pneg %p64
        %p171 = pneg %p61
        %p172 = pneg %p85
        %p173 = pneg %p82
        %p174 = pneg %p111
        %p175 = pneg %p108
        %s176 = sand.u32 %s98, 1
        %s177 = scalar_lea.sflag [#allocation3], %s176
        %s178 = sand.u32 %s98, 1
        %s179 = scalar_lea.vmem [#allocation2], %s178
        %s180 = smul.u32 2, %s17
        %p181 = scmp.lt.s32.totalorder %s180, 3
        %s182 = scalar_select %p181, %s180, 3
        %s183 = smul.addr %s182, 8
        %s184 = scalar_lea.vmem %s0, %s183
        %s185 = smul.u32 2, %s17
        %s186 = smul.u32 2, %s17
        %p187 = scmp.lt.s32.totalorder %s186, 3
        %s188 = scalar_select %p187, %s186, 3
        %s189 = smul.addr %s188, 8
        %s190 = scalar_lea.vmem %s1, %s189
        %s191 = smul.u32 2, %s17
        %v192 = vld [vmem:[%s184] sm:$0xff]
        %v193 = vld [vmem:[%s184 + $0x8] sm:$0xff]
        %v194 = vld [vmem:[%s190] sm:$0xff]
        %v195 = vld [vmem:[%s190 + $0x8] sm:$0xff]
        %v196 = vlaneseq
        %v197 = vand.u32 %v196, 127
        %vm198 = vcmp.eq.s32.totalorder %v197, 0
        %vm199 = vcmp.eq.s32.totalorder %v197, 15
        %v200 = vld [vmem:[%s2] sm:$0xff]
        %v201 = vld [vmem:[%s2 + $0x8] sm:$0xff]
        %vm202 = vcmp.eq.f32.partialorder %v200, 0.0
        %vm203 = vcmp.eq.f32.partialorder %v201, 0.0
        %vm204 = vcmp.eq.f32.partialorder %v200, 15.0
        %vm205 = vcmp.eq.f32.partialorder %v201, 15.0
        %vm206 = vcmask 1047680
        %207 = vrot.lane.b32.xlu0 %v192, 16
        %v208 = vpop.permute.xlu0 %207
        %v209 = vsel %vm206, %v208, %v192
        %210 = vrot.lane.b32.xlu0 %v193, 16
        %v211 = vpop.permute.xlu0 %210
        %v212 = vsel %vm206, %v211, %v193
        %213 = vrot.lane.b32.xlu0 %v209, 16
        %v214 = vpop.permute.xlu0 %213
        %215 = vrot.lane.b32.xlu0 %v212, 16
        %v216 = vpop.permute.xlu0 %215
        %v217 = vsel %vm206, %v214, %v192
        %v218 = vsel %vm206, %v216, %v193
        %221 = vrot.lane.b32.xlu0 %v217, 113
        %v222 = vpop.permute.xlu0 %221
        %223 = vrot.lane.b32.xlu0 %v218, 113
        %v224 = vpop.permute.xlu0 %223
        %v227 = vsel %vm198, 0.0, %v222
        %v228 = vsel %vm198, 0.0, %v224
        %229 = vrot.lane.b32.xlu0 %v217, 127
        %v230 = vpop.permute.xlu0 %229
        %231 = vrot.lane.b32.xlu0 %v218, 127
        %v232 = vpop.permute.xlu0 %231
        %v235 = vsel %vm199, 0.0, %v230
        %v236 = vsel %vm199, 0.0, %v232
        %v237 = vsub.f32 %v235, %v227
        %v238 = vsub.f32 %v236, %v228
        %v239 = vmul.f32 %v192, 2.0
        %v240 = vmul.f32 %v193, 2.0
        %v241 = vadd.f32 %v227, %v239
        %v242 = vadd.f32 %v228, %v240
        %v243 = vadd.f32 %v241, %v235
        %v244 = vadd.f32 %v242, %v236
        %v245 = vrot.slane %v237, 7
        %v246 = vrot.slane %v238, 7
        %v247 = vlaneseq
        %v248 = vshrl.u32 %v247, 7
        %vm249 = vcmp.lt.s32.totalorder %v248, 1
        %v250 = vsel %vm249, %v245, %v246
        %v251 = vsel %vm249, %v246, %v245
        %v252 = vsel %vm202, 1, 0
        %v253 = vsel %vm203, 1, 0
        %254 = vset.pattern.permute.xlu0 0
        %255 = vperm.xlu0 %254, %v252
        %v256 = vpop.permute.xlu0 %255
        %257 = vset.pattern.permute.xlu0 0
        %258 = vperm.xlu0 %257, %v253
        %v259 = vpop.permute.xlu0 %258
        %vm260 = vcmp.eq.s32.totalorder %v256, 1
        %vm261 = vcmp.eq.s32.totalorder %v259, 1
        %v262 = vsel %vm260, 0.0, %v251
        %v263 = vsel %vm261, 0.0, %v250
        %v264 = vrot.slane %v237, 1
        %v265 = vrot.slane %v238, 1
        %vm266 = vcmp.lt.s32.totalorder %v248, 7
        %v267 = vsel %vm266, %v264, %v265
        %v268 = vsel %vm266, %v265, %v264
        %v269 = vsel %vm204, 1, 0
        %v270 = vsel %vm205, 1, 0
        %271 = vset.pattern.permute.xlu0 0
        %272 = vperm.xlu0 %271, %v269
        %v273 = vpop.permute.xlu0 %272
        %274 = vset.pattern.permute.xlu0 0
        %275 = vperm.xlu0 %274, %v270
        %v276 = vpop.permute.xlu0 %275
        %vm277 = vcmp.eq.s32.totalorder %v273, 1
        %vm278 = vcmp.eq.s32.totalorder %v276, 1
        %v279 = vsel %vm277, 0.0, %v267
        %v280 = vsel %vm278, 0.0, %v268
        %v281 = vrot.slane %v243, 7
        %v282 = vrot.slane %v244, 7
        %v283 = vsel %vm249, %v281, %v282
        %v284 = vsel %vm249, %v282, %v281
        %v285 = vsel %vm260, 0.0, %v284
        %v286 = vsel %vm261, 0.0, %v283
        %v287 = vrot.slane %v243, 1
        %v288 = vrot.slane %v244, 1
        %v289 = vsel %vm266, %v287, %v288
        %v290 = vsel %vm266, %v288, %v287
        %v291 = vsel %vm277, 0.0, %v289
        %v292 = vsel %vm278, 0.0, %v290
        %v293 = vmul.f32 %v237, 2.0
        %v294 = vmul.f32 %v238, 2.0
        %v295 = vadd.f32 %v262, %v293
        %v296 = vadd.f32 %v263, %v294
        %v297 = vadd.f32 %v295, %v279
        %v298 = vadd.f32 %v296, %v280
        %v299 = vsub.f32 %v291, %v285
        %v300 = vsub.f32 %v292, %v286
        %v301 = vmul.f32 %v297, %v297
        %v302 = vmul.f32 %v298, %v298
        %v303 = vmul.f32 %v299, %v299
        %v304 = vmul.f32 %v300, %v300
        %v305 = vadd.f32 %v301, %v303
        %v306 = vadd.f32 %v302, %v304
        %v307 = vadd.f32 %v305, 1.0
        %v308 = vadd.f32 %v306, 1.0
        %v309 = vrsqrt.pop %v307
        %v310 = vrsqrt.pop %v308
        %v311 = vmul.f32 %v297, %v309
        %v312 = vmul.f32 %v298, %v310
        %v313 = vmul.f32 %v299, %v309
        %v314 = vmul.f32 %v300, %v310
        %315 = vrot.lane.b32.xlu0 %v194, 16
        %v316 = vpop.permute.xlu0 %315
        %v317 = vsel %vm206, %v316, %v194
        %318 = vrot.lane.b32.xlu0 %v195, 16
        %v319 = vpop.permute.xlu0 %318
        %v320 = vsel %vm206, %v319, %v195
        %321 = vrot.lane.b32.xlu0 %v317, 16
        %v322 = vpop.permute.xlu0 %321
        %323 = vrot.lane.b32.xlu0 %v320, 16
        %v324 = vpop.permute.xlu0 %323
        %v325 = vsel %vm206, %v322, %v194
        %v326 = vsel %vm206, %v324, %v195
        %329 = vrot.lane.b32.xlu0 %v325, 113
        %v330 = vpop.permute.xlu0 %329
        %331 = vrot.lane.b32.xlu0 %v326, 113
        %v332 = vpop.permute.xlu0 %331
        %v335 = vsel %vm198, 0.0, %v330
        %v336 = vsel %vm198, 0.0, %v332
        %337 = vrot.lane.b32.xlu0 %v325, 127
        %v338 = vpop.permute.xlu0 %337
        %339 = vrot.lane.b32.xlu0 %v326, 127
        %v340 = vpop.permute.xlu0 %339
        %v343 = vsel %vm199, 0.0, %v338
        %v344 = vsel %vm199, 0.0, %v340
        %v345 = vsub.f32 %v343, %v335
        %v346 = vsub.f32 %v344, %v336
        %v347 = vmul.f32 %v194, 2.0
        %v348 = vmul.f32 %v195, 2.0
        %v349 = vadd.f32 %v335, %v347
        %v350 = vadd.f32 %v336, %v348
        %v351 = vadd.f32 %v349, %v343
        %v352 = vadd.f32 %v350, %v344
        %v353 = vrot.slane %v345, 7
        %v354 = vrot.slane %v346, 7
        %v355 = vsel %vm249, %v353, %v354
        %v356 = vsel %vm249, %v354, %v353
        %v357 = vsel %vm260, 0.0, %v356
        %v358 = vsel %vm261, 0.0, %v355
        %v359 = vrot.slane %v345, 1
        %v360 = vrot.slane %v346, 1
        %v361 = vsel %vm266, %v359, %v360
        %v362 = vsel %vm266, %v360, %v359
        %v363 = vsel %vm277, 0.0, %v361
        %v364 = vsel %vm278, 0.0, %v362
        %v365 = vrot.slane %v351, 7
        %v366 = vrot.slane %v352, 7
        %v367 = vsel %vm249, %v365, %v366
        %v368 = vsel %vm249, %v366, %v365
        %v369 = vsel %vm260, 0.0, %v368
        %v370 = vsel %vm261, 0.0, %v367
        %v371 = vrot.slane %v351, 1
        %v372 = vrot.slane %v352, 1
        %v373 = vsel %vm266, %v371, %v372
        %v374 = vsel %vm266, %v372, %v371
        %v375 = vsel %vm277, 0.0, %v373
        %v376 = vsel %vm278, 0.0, %v374
        %v377 = vmul.f32 %v345, 2.0
        %v378 = vmul.f32 %v346, 2.0
        %v379 = vadd.f32 %v357, %v377
        %v380 = vadd.f32 %v358, %v378
        %v381 = vadd.f32 %v379, %v363
        %v382 = vadd.f32 %v380, %v364
        %v383 = vsub.f32 %v375, %v369
        %v384 = vsub.f32 %v376, %v370
        %v385 = vmul.f32 %v381, %v381
        %v386 = vmul.f32 %v382, %v382
        %v387 = vmul.f32 %v383, %v383
        %v388 = vmul.f32 %v384, %v384
        %v389 = vadd.f32 %v385, %v387
        %v390 = vadd.f32 %v386, %v388
        %v391 = vadd.f32 %v389, 1.0
        %v392 = vadd.f32 %v390, 1.0
        %v393 = vrsqrt.pop %v391
        %v394 = vrsqrt.pop %v392
        %v395 = vmul.f32 %v381, %v393
        %v396 = vmul.f32 %v382, %v394
        %v397 = vmul.f32 %v383, %v393
        %v398 = vmul.f32 %v384, %v394
        %v399 = vsub.f32 %v311, %v395
        %v400 = vsub.f32 %v312, %v396
        %v401 = vsub.f32 %v313, %v397
        %v402 = vsub.f32 %v314, %v398
        %v403 = vsub.f32 %v309, %v393
        %v404 = vsub.f32 %v310, %v394
        %v405 = vmul.f32 %v399, %v399
        %v406 = vmul.f32 %v400, %v400
        %v407 = vmul.f32 %v401, %v401
        %v408 = vmul.f32 %v402, %v402
        %v409 = vadd.f32 %v405, %v407
        %v410 = vadd.f32 %v406, %v408
        %v411 = vmul.f32 %v403, %v403
        %v412 = vmul.f32 %v404, %v404
        %v413 = vadd.f32 %v409, %v411
        %v414 = vadd.f32 %v410, %v412
        %vm415 = vcmask 130048
        %v416 = vsel %vm415, %v413, 0.0
        %v417 = vsel %vm415, %v414, 0.0
        %v418 = vadd.f32 %v416, %v417
        %v419 = vrot.slane %v418, 4
        %v420 = vadd.f32 %v418, %v419
        %v421 = vrot.slane %v420, 2
        %v422 = vadd.f32 %v420, %v421
        %v423 = vrot.slane %v422, 1
        %v424 = vadd.f32 %v422, %v423
        %vm425 = vcmask 122880
        %426 = vst.msk [vmem:[%s179] sm:$0x1] %vm425, %v424
        %s427 = sand.u32 %s98, 1
        %s428 = scalar_lea.sflag [#allocation3], %s427
        %s429 = sand.u32 %s98, 1
        %s430 = scalar_lea.vmem [#allocation2], %s429
        // Predicated region
        $region33: #{tpu_custom_call.1} parent=31 // pred_check
          %p431 = pneg %p108
        $region34: #{tpu_custom_call.1} parent=31 // pred_check_branch
          %433 = sbr.rel (%p431) target = $region36
        $region35: #{tpu_custom_call.1} parent=31 // pred_region
          %s435 = ssub.s32 16, 16
          %436 = vsyncadd %s428, %s435
          %s437 = smul.addr %s17, 16
          %s438 = scalar_lea.hbm %s3, %s437
          %s440 = sshll.u32 %s430, 4
          %s441 = int_to_ptr.vmem [resolvable:$true] %s440
          %443 = dma.vmem_to_hbm [thread:$0]  %s441, 16, %s438, %s428
        $region36: #{tpu_custom_call.1} parent=31 // pred_fallthru
          _
      $region32: #{tpu_custom_call.1} parent=5 // pred_fallthru
        _
      %p444 = scmp.le.s32.totalorder 2, %s12
      // Predicated region
      $region37: #{tpu_custom_call.1} parent=5 // pred_check
        %p445 = pneg %p444
      $region38: #{tpu_custom_call.1} parent=5 // pred_check_branch
        %447 = sbr.rel (%p445) target = $region40
      $region39: #{tpu_custom_call.1} parent=5 // pred_region
        %s448 = ssub.s32 %s12, 2
        // Predicated region
        $region41: #{tpu_custom_call.1} parent=39 // pred_check
          %p449 = pneg %p114
        $region42: #{tpu_custom_call.1} parent=39 // pred_check_branch
          %451 = sbr.rel (%p449) target = $region44
        $region43: #{tpu_custom_call.1} parent=39 // pred_region
          %s452 = sand.u32 %s99, 1
          %s453 = scalar_lea.sflag [#allocation3], %s452
          %s454 = sand.u32 %s99, 1
          %s455 = scalar_lea.vmem [#allocation2], %s454
          %456 = dma.done %s453, 16
        $region44: #{tpu_custom_call.1} parent=39 // pred_fallthru
          _
      $region40: #{tpu_custom_call.1} parent=5 // pred_fallthru
        _
    $region6: #{tpu_custom_call.1} parent=1 // loop_footer
      %s16 = sadd.s32 1, %s12
    $region7: #{tpu_custom_call.1} parent=1 // loop_footer_branch
      %11 = sbr.rel target = $region3
    $region8: #{tpu_custom_call.1} parent=1 // loop_exit
      _
    %457 = vsyncpa [#allocation3], 1
    %s458 = scalar_lea.sflag [#allocation3], 1
    %459 = vsyncpa %s458, 1

</llo_original>
